<compile_context>
chip_gen: v5e
topology: v5e:2x2
jax: 0.10.0
libtpu: 0.0.40
codegen_flags: <defaults>
</compile_context>

<pallas_src>
import jax
import jax.numpy as jnp
from jax.experimental import pallas as pl
from jax.experimental.pallas import tpu as pltpu

# Fixed architecture of MyMLP (PyTorch defaults).
IN_F, H1, H2, OUT_F = 64, 32, 16, 10
PAD = 128  # lane width; every hidden/output activation is zero-padded to this


def _round_up(x, m):
    return (x + m - 1) // m * m


def _mlp_kernel(x_ref, w1_ref, w23_ref, b_ref, o_ref):
    # x_ref:   (tb, 64)       f32   batch tile
    # w1_ref:  (64, 128)      f32   W1 in [:, :32], rest 0
    # w23_ref: (2, 128, 128)  f32   W2 in [0, :32, :16], W3 in [1, :16, :10], rest 0
    # b_ref:   (3, 1, 128)    f32   b1/b2/b3 zero-padded to 128 lanes
    # o_ref:   (OUT_F, tb)    f32   transposed, lane-dense output tile
    x = x_ref[...]                                                     # (tb, 64)

    # Layer 1: Linear(64 -> 32) + ReLU   (padded cols 32.. stay exactly 0)
    h = jnp.dot(x, w1_ref[...], preferred_element_type=jnp.float32)    # (tb, 128)
    h = jnp.maximum(h + b_ref[0], 0.0)

    # Layer 2: Linear(32 -> 16) + ReLU   (zero rows/cols of the slab contribute 0)
    h = jnp.dot(h, w23_ref[0], preferred_element_type=jnp.float32)     # (tb, 128)
    h = jnp.maximum(h + b_ref[1], 0.0)

    # Layer 3: Linear(16 -> 10)          (cols OUT_F.. are exactly 0)
    h = jnp.dot(h, w23_ref[1], preferred_element_type=jnp.float32)     # (tb, 128)
    h = h + b_ref[2]

    # Lane-dense store: transpose on the (otherwise idle) XLU so the lane dim of
    # the store is the batch tile (multiple of 128) instead of 10 -> no masked
    # vst path, small padded VMEM out buffer.  Only the 10 real rows are kept.
    ht = jnp.transpose(h)                                              # (128, tb)
    o_ref[...] = ht[:OUT_F, :]                                         # (10, tb)


def pack_params(w1, b1, w2, b2, w3, b3):
    """Pack (in,out) weights / (1,out) biases into zero-padded f32 slabs."""
    f32 = jnp.float32
    w1p = jnp.zeros((IN_F, PAD), f32).at[:, :H1].set(w1.astype(f32))
    w23p = jnp.zeros((2, PAD, PAD), f32)
    w23p = w23p.at[0, :H1, :H2].set(w2.astype(f32))
    w23p = w23p.at[1, :H2, :OUT_F].set(w3.astype(f32))
    bp = jnp.zeros((3, 1, PAD), f32)
    bp = bp.at[0, :, :H1].set(b1.reshape(1, -1).astype(f32))
    bp = bp.at[1, :, :H2].set(b2.reshape(1, -1).astype(f32))
    bp = bp.at[2, :, :OUT_F].set(b3.reshape(1, -1).astype(f32))
    return w1p, w23p, bp


def mlp_forward(x, w1p, w23p, bp, *, tile_b=4096):
    """x: (B, ...) whose trailing dims flatten to IN_F features. Returns (B, OUT_F) f32."""
    B = x.shape[0]
    x2d = x.reshape(B, -1)
    if x2d.dtype != jnp.float32:
        x2d = x2d.astype(jnp.float32)
    assert x2d.shape[1] == IN_F, f"expected {IN_F} flattened features, got {x2d.shape[1]}"

    if B <= 256:
        # Tiny batch: single grid step, block == (padded) full array.  Pad rows to a
        # sublane multiple so the in-kernel transpose sees an (8k, 128) operand.
        Bp = _round_up(max(B, 8), 8)
        if Bp != B:
            x2d = jnp.pad(x2d, ((0, Bp - B), (0, 0)))
        tb = Bp
    else:
        # Large batch: >= 2 (even) grid steps so v7x can split the parallel batch
        # axis across its two TensorCores; tb a multiple of 128 keeps the
        # transposed output block lane-aligned.  Ragged last tiles are handled by
        # Pallas padding (garbage rows flow through dot/ReLU only and their output
        # columns are masked at writeback).
        Bp = B
        n_steps = max(2, pl.cdiv(B, tile_b))
        if n_steps % 2:
            n_steps += 1
        tb = min(_round_up(tile_b, PAD), _round_up(pl.cdiv(B, n_steps), PAD))
    grid = (pl.cdiv(Bp, tb),)

    flops = 2 * B * (IN_F * H1 + H1 * H2 + H2 * OUT_F)
    bytes_accessed = (Bp * IN_F * 4           # f32 activations read
                      + OUT_F * Bp * 4        # f32 output write
                      + (w1p.size + w23p.size + bp.size) * 4)
    cost = pl.CostEstimate(flops=flops, transcendentals=0,
                           bytes_accessed=bytes_accessed)

    out_t = pl.pallas_call(
        _mlp_kernel,
        out_shape=jax.ShapeDtypeStruct((OUT_F, Bp), jnp.float32),
        grid=grid,
        in_specs=[
            # Activations: blocked over the batch axis (pipelined HBM->VMEM).
            pl.BlockSpec((tb, IN_F), lambda i: (i, 0)),
            # Packed weights / biases: constant block index -> DMA'd once, VMEM-resident.
            pl.BlockSpec(w1p.shape, lambda i: (0, 0)),
            pl.BlockSpec(w23p.shape, lambda i: (0, 0, 0)),
            pl.BlockSpec(bp.shape, lambda i: (0, 0, 0)),
        ],
        # Transposed output: lane dim = tb (multiple of 128 or full array) -> unmasked,
        # lane-dense stores; the padded VMEM out buffer is only (16, tb) f32.
        out_specs=pl.BlockSpec((OUT_F, tb), lambda i: (0, i)),
        compiler_params=pltpu.CompilerParams(
            dimension_semantics=("parallel",),
            # v5e's default scoped VMEM is 16 MiB; 32 MiB is safe on every
            # generation and leaves room for tb=4096 tiles + intermediates.
            vmem_limit_bytes=32 * 1024 * 1024),
        cost_estimate=cost,
    )(x2d, w1p, w23p, bp)

    # Back to the module's (B, OUT_F) layout.  Consumers that can take (OUT_F, B)
    # directly can skip this transpose and keep the lane-dense form.
    return out_t[:, :B].T


def init_params(key, in_features=IN_F, out_features=OUT_F):
    """Deterministic synthetic init (uniform, PyTorch-Linear-like bounds)."""
    dims = [(in_features, H1), (H1, H2), (H2, out_features)]
    params = []
    for fan_in, fan_out in dims:
        kw, kb, key = jax.random.split(key, 3)
        bound = 1.0 / (fan_in ** 0.5)
        w = jax.random.uniform(kw, (fan_in, fan_out), jnp.float32, -bound, bound)
        b = jax.random.uniform(kb, (1, fan_out), jnp.float32, -bound, bound)
        params += [w, b]
    return tuple(params)


def _reference(x, w1, b1, w2, b2, w3, b3):
    """Plain-JAX f32 reference == the PyTorch forward (weights stored as (in, out))."""
    B = x.shape[0]
    h = x.reshape(B, -1).astype(jnp.float32)
    h = jnp.maximum(h @ w1 + b1, 0.0)
    h = jnp.maximum(h @ w2 + b2, 0.0)
    return h @ w3 + b3


if __name__ == "__main__":
    key = jax.random.PRNGKey(0)
    kx, kp, kx_big = jax.random.split(key, 3)

    params = init_params(kp)
    w1p, w23p, bp = pack_params(*params)

    # Small case matching the module: (B, C, H, W) = (2, 4, 4, 4) -> 64 features.
    x = jax.random.normal(kx, (2, 4, 4, 4), dtype=jnp.float32)
    out = jax.block_until_ready(mlp_forward(x, w1p, w23p, bp))
    ref = _reference(x, *params)
    assert out.shape == (2, OUT_F), out.shape
    # Tolerance covers the TPU default matmul precision (MXU vs XLA accumulation order).
    assert jnp.allclose(out, ref, atol=2e-2, rtol=2e-2), "mismatch vs reference (small)"

    # Larger, non-tile-multiple batch: exercises the multi-step grid, the
    # VMEM-resident weights, the lane-dense transposed store and ragged-tile masking.
    xb = jax.random.normal(kx_big, (3000, IN_F), dtype=jnp.float32)
    outb = jax.block_until_ready(mlp_forward(xb, w1p, w23p, bp))
    refb = _reference(xb, *params)
    assert outb.shape == (3000, OUT_F), outb.shape
    assert jnp.allclose(outb, refb, atol=2e-2, rtol=2e-2), "mismatch vs reference (tiled)"

    print("KERNEL_OK")
</pallas_src>

<mosaic_0001>
module attributes {stable_mosaic.version = 11 : i64} {
  func.func @_mlp_kernel(%arg0: i32, %arg1: memref<8x64xf32, #tpu.memory_space<vmem>>, %arg2: memref<64x128xf32, #tpu.memory_space<vmem>>, %arg3: memref<2x128x128xf32, #tpu.memory_space<vmem>>, %arg4: memref<3x1x128xf32, #tpu.memory_space<vmem>>, %arg5: memref<10x8xf32, #tpu.memory_space<vmem>>) attributes {dimension_semantics = [#tpu.dimension_semantics<parallel>], iteration_bounds = array<i64: 1>, scalar_prefetch = 0 : i64, scratch_operands = 0 : i64, tpu.core_type = #tpu.core_type<tc>, window_params = [{transform_indices = @transform_0, window_bounds = array<i64: 8, 64>}, {pipeline_mode = #tpu.pipeline_mode<synchronous>, transform_indices = @transform_1, window_bounds = array<i64: 64, 128>}, {pipeline_mode = #tpu.pipeline_mode<synchronous>, transform_indices = @transform_2, window_bounds = array<i64: 2, 128, 128>}, {pipeline_mode = #tpu.pipeline_mode<synchronous>, transform_indices = @transform_3, window_bounds = array<i64: 3, 1, 128>}, {transform_indices = @transform_4, window_bounds = array<i64: 10, 8>}]} {
    %c0 = arith.constant 0 : index
    %c0_0 = arith.constant 0 : index
    %0 = vector.load %arg1[%c0, %c0_0] : memref<8x64xf32, #tpu.memory_space<vmem>>, vector<8x64xf32>
    %c0_1 = arith.constant 0 : index
    %c0_2 = arith.constant 0 : index
    %1 = vector.load %arg2[%c0_1, %c0_2] : memref<64x128xf32, #tpu.memory_space<vmem>>, vector<64x128xf32>
    %cst = arith.constant dense<0.000000e+00> : vector<8x128xf32>
    %2 = tpu.matmul %0, %1, %cst {dimension_numbers = #tpu.dot_dimension_numbers<[1], [0], [0], [1], [0, 0, 1, 1], [], []>} : vector<8x64xf32>, vector<64x128xf32>, vector<8x128xf32> -> vector<8x128xf32>
    %c0_3 = arith.constant 0 : index
    %c0_4 = arith.constant 0 : index
    %c0_5 = arith.constant 0 : index
    %3 = vector.load %arg4[%c0_3, %c0_4, %c0_5] : memref<3x1x128xf32, #tpu.memory_space<vmem>>, vector<1x1x128xf32>
    %4 = vector.shape_cast %3 : vector<1x1x128xf32> to vector<1x128xf32>
    %5 = vector.broadcast %4 : vector<1x128xf32> to vector<8x128xf32>
    %6 = arith.addf %2, %5 : vector<8x128xf32>
    %cst_6 = arith.constant 0.000000e+00 : f32
    %7 = vector.broadcast %cst_6 : f32 to vector<8x128xf32>
    %8 = arith.maximumf %6, %7 : vector<8x128xf32>
    %c0_7 = arith.constant 0 : index
    %c0_8 = arith.constant 0 : index
    %c0_9 = arith.constant 0 : index
    %9 = vector.load %arg3[%c0_7, %c0_8, %c0_9] : memref<2x128x128xf32, #tpu.memory_space<vmem>>, vector<1x128x128xf32>
    %10 = vector.shape_cast %9 : vector<1x128x128xf32> to vector<128x128xf32>
    %cst_10 = arith.constant dense<0.000000e+00> : vector<8x128xf32>
    %11 = tpu.matmul %8, %10, %cst_10 {dimension_numbers = #tpu.dot_dimension_numbers<[1], [0], [0], [1], [0, 0, 1, 1], [], []>} : vector<8x128xf32>, vector<128x128xf32>, vector<8x128xf32> -> vector<8x128xf32>
    %c1 = arith.constant 1 : index
    %c0_11 = arith.constant 0 : index
    %c0_12 = arith.constant 0 : index
    %12 = vector.load %arg4[%c1, %c0_11, %c0_12] : memref<3x1x128xf32, #tpu.memory_space<vmem>>, vector<1x1x128xf32>
    %13 = vector.shape_cast %12 : vector<1x1x128xf32> to vector<1x128xf32>
    %14 = vector.broadcast %13 : vector<1x128xf32> to vector<8x128xf32>
    %15 = arith.addf %11, %14 : vector<8x128xf32>
    %cst_13 = arith.constant 0.000000e+00 : f32
    %16 = vector.broadcast %cst_13 : f32 to vector<8x128xf32>
    %17 = arith.maximumf %15, %16 : vector<8x128xf32>
    %c1_14 = arith.constant 1 : index
    %c0_15 = arith.constant 0 : index
    %c0_16 = arith.constant 0 : index
    %18 = vector.load %arg3[%c1_14, %c0_15, %c0_16] : memref<2x128x128xf32, #tpu.memory_space<vmem>>, vector<1x128x128xf32>
    %19 = vector.shape_cast %18 : vector<1x128x128xf32> to vector<128x128xf32>
    %cst_17 = arith.constant dense<0.000000e+00> : vector<8x128xf32>
    %20 = tpu.matmul %17, %19, %cst_17 {dimension_numbers = #tpu.dot_dimension_numbers<[1], [0], [0], [1], [0, 0, 1, 1], [], []>} : vector<8x128xf32>, vector<128x128xf32>, vector<8x128xf32> -> vector<8x128xf32>
    %c2 = arith.constant 2 : index
    %c0_18 = arith.constant 0 : index
    %c0_19 = arith.constant 0 : index
    %21 = vector.load %arg4[%c2, %c0_18, %c0_19] : memref<3x1x128xf32, #tpu.memory_space<vmem>>, vector<1x1x128xf32>
    %22 = vector.shape_cast %21 : vector<1x1x128xf32> to vector<1x128xf32>
    %23 = vector.broadcast %22 : vector<1x128xf32> to vector<8x128xf32>
    %24 = arith.addf %20, %23 : vector<8x128xf32>
    %25 = tpu.transpose %24, [1, 0] : vector<8x128xf32> -> vector<128x8xf32>
    %26 = vector.extract_strided_slice %25 {offsets = [0, 0], sizes = [10, 8], strides = [1, 1]} : vector<128x8xf32> to vector<10x8xf32>
    %c0_20 = arith.constant 0 : index
    %c0_21 = arith.constant 0 : index
    %27 = vector.load %arg5[%c0_20, %c0_21] : memref<10x8xf32, #tpu.memory_space<vmem>>, vector<10x8xf32>
    tpu.vector_store %arg5[%c0_20, %c0_21], %26 {strides = array<i32>} : memref<10x8xf32, #tpu.memory_space<vmem>>, vector<10x8xf32>,
    return
  }
  func.func @transform_0(%arg0: i32) -> (i32, i32) {
    %c0_i32 = arith.constant 0 : i32
    %c0_i32_0 = arith.constant 0 : i32
    return %arg0, %c0_i32 : i32, i32
  }
  func.func @transform_1(%arg0: i32) -> (i32, i32) {
    %c0_i32 = arith.constant 0 : i32
    %c0_i32_0 = arith.constant 0 : i32
    %c0_i32_1 = arith.constant 0 : i32
    return %c0_i32, %c0_i32_0 : i32, i32
  }
  func.func @transform_2(%arg0: i32) -> (i32, i32, i32) {
    %c0_i32 = arith.constant 0 : i32
    %c0_i32_0 = arith.constant 0 : i32
    %c0_i32_1 = arith.constant 0 : i32
    %c0_i32_2 = arith.constant 0 : i32
    return %c0_i32, %c0_i32_0, %c0_i32_1 : i32, i32, i32
  }
  func.func @transform_3(%arg0: i32) -> (i32, i32, i32) {
    %c0_i32 = arith.constant 0 : i32
    %c0_i32_0 = arith.constant 0 : i32
    %c0_i32_1 = arith.constant 0 : i32
    %c0_i32_2 = arith.constant 0 : i32
    return %c0_i32, %c0_i32_0, %c0_i32_1 : i32, i32, i32
  }
  func.func @transform_4(%arg0: i32) -> (i32, i32) {
    %c0_i32 = arith.constant 0 : i32
    %c0_i32_0 = arith.constant 0 : i32
    return %c0_i32, %arg0 : i32, i32
  }
}

</mosaic_0001>

<llo_original>
// kernel: tpu_custom_call.1
$region0: #{tpu_custom_call.1}
  #allocation0 [shape = 'u32[]', space=smem, size = 0x4, offset = 0x4, fixed_abs, tag = 'smem constant byte address 0x4 - core index']
  #allocation1 [shape = 'u32[72,128]{1,0:T(1,128)}', space=vmem, size = 0x9000, scoped, tag = 'internal scratch']
  %s0 = inlined_call_operand.hbm [shape: f32[8,64], index: 0, kind: input, shape index: {}]
  %s1 = inlined_call_operand.hbm [shape: f32[64,128], index: 1, kind: input, shape index: {}]
  %s2 = inlined_call_operand.hbm [shape: f32[2,128,128], index: 2, kind: input, shape index: {}]
  %s3 = inlined_call_operand.hbm [shape: f32[3,1,128], index: 3, kind: input, shape index: {}]
  %s4 = inlined_call_operand.vmem [shape: f32[10,8], index: 4, kind: output, shape index: {}]
  %s5 = sld [smem:[#allocation0]]
  $region42: #{tpu_custom_call.1} parent=0
    _
  %s7 = ssub.s32 1, %s5
  %s8 = scalar_select 0, %s7, %s5
  $region1: #{tpu_custom_call.1} parent=0
    #allocation2 [shape = 'u8[4096]{0}', space=vmem, size = 0x1000, scoped, tag = 'input window, operand 0, single buffered']
    #allocation3 [shape = 's32[1]{0}', space=sflag, size = 0x4, scoped, tag = 'scoped memory for tpu_custom_call.1']
    #allocation4 [shape = 'u8[32768]{0}', space=vmem, size = 0x8000, scoped, tag = 'input window, operand 1, single buffered']
    #allocation5 [shape = 's32[1]{0}', space=sflag, size = 0x4, scoped, tag = 'scoped memory for tpu_custom_call.1']
    #allocation6 [shape = 'u8[131072]{0}', space=vmem, size = 0x20000, scoped, tag = 'input window, operand 2, single buffered']
    #allocation7 [shape = 'u8[1536]{0}', space=vmem, size = 0x800, scoped, tag = 'input window, operand 3, single buffered']
    #allocation8 [shape = 's32[1]{0}', space=sflag, size = 0x4, scoped, tag = 'scoped memory for tpu_custom_call.1']
    %9 = vsyncpa [#allocation3], 0
    %10 = vsyncpa [#allocation5], 0
    %11 = vsyncpa [#allocation8], 0
    // Predicated region
    $region2: #{tpu_custom_call.1} parent=1 // pred_check
      _
    $region3: #{tpu_custom_call.1} parent=1 // pred_check_branch
      %13 = sbr.rel (0) target = $region5
    $region4: #{tpu_custom_call.1} parent=1 // pred_region
      %15 = vsyncadd [#allocation3], 0
      %s17 = sshll.u32 %s0, 4
      %s18 = int_to_ptr.hbm [resolvable:$true] %s17
      %s19 = sshll.u32 [#allocation2], 4
      %s20 = int_to_ptr.vmem [resolvable:$true] %s19
      %22 = dma.hbm_to_vmem [thread:$0]  %s18, 128, %s20, [#allocation3]
    $region5: #{tpu_custom_call.1} parent=1 // pred_fallthru
      _
    // Predicated region
    $region6: #{tpu_custom_call.1} parent=1 // pred_check
      _
    $region7: #{tpu_custom_call.1} parent=1 // pred_check_branch
      %24 = sbr.rel (0) target = $region9
    $region8: #{tpu_custom_call.1} parent=1 // pred_region
      %26 = vsyncadd [#allocation5], 0
      %s27 = sshll.u32 %s1, 4
      %s28 = int_to_ptr.hbm [resolvable:$true] %s27
      %s29 = sshll.u32 [#allocation4], 4
      %s30 = int_to_ptr.vmem [resolvable:$true] %s29
      %35 = dma.hbm_to_vmem [thread:$0]  %s28, 1024, %s30, [#allocation5], 128, 128, 8
    $region9: #{tpu_custom_call.1} parent=1 // pred_fallthru
      _
    // Predicated region
    $region10: #{tpu_custom_call.1} parent=1 // pred_check
      _
    $region11: #{tpu_custom_call.1} parent=1 // pred_check_branch
      %37 = sbr.rel (0) target = $region13
    $region12: #{tpu_custom_call.1} parent=1 // pred_region
      %39 = vsyncadd [#allocation5], 0
      %s40 = sshll.u32 %s2, 4
      %s41 = int_to_ptr.hbm [resolvable:$true] %s40
      %s42 = sshll.u32 [#allocation6], 4
      %s43 = int_to_ptr.vmem [resolvable:$true] %s42
      %48 = dma.hbm_to_vmem [thread:$0]  %s41, 4096, %s43, [#allocation5], 128, 128, 8
    $region13: #{tpu_custom_call.1} parent=1 // pred_fallthru
      _
    // Predicated region
    $region14: #{tpu_custom_call.1} parent=1 // pred_check
      _
    $region15: #{tpu_custom_call.1} parent=1 // pred_check_branch
      %50 = sbr.rel (0) target = $region17
    $region16: #{tpu_custom_call.1} parent=1 // pred_region
      %52 = vsyncadd [#allocation8], 0
      %s53 = sshll.u32 %s3, 4
      %s54 = int_to_ptr.hbm [resolvable:$true] %s53
      %s55 = sshll.u32 [#allocation7], 4
      %s56 = int_to_ptr.vmem [resolvable:$true] %s55
      %61 = dma.hbm_to_vmem [thread:$0]  %s54, 48, %s56, [#allocation8], 16, 16, 1
    $region17: #{tpu_custom_call.1} parent=1 // pred_fallthru
      _
    // Predicated region
    $region18: #{tpu_custom_call.1} parent=1 // pred_check
      _
    $region19: #{tpu_custom_call.1} parent=1 // pred_check_branch
      %63 = sbr.rel (0) target = $region21
    $region20: #{tpu_custom_call.1} parent=1 // pred_region
      %65 = dma.done [#allocation3], 128
    $region21: #{tpu_custom_call.1} parent=1 // pred_fallthru
      _
    // Predicated region
    $region22: #{tpu_custom_call.1} parent=1 // pred_check
      _
    $region23: #{tpu_custom_call.1} parent=1 // pred_check_branch
      %67 = sbr.rel (0) target = $region25
    $region24: #{tpu_custom_call.1} parent=1 // pred_region
      %69 = dma.done [#allocation5], 1024
    $region25: #{tpu_custom_call.1} parent=1 // pred_fallthru
      _
    // Predicated region
    $region26: #{tpu_custom_call.1} parent=1 // pred_check
      _
    $region27: #{tpu_custom_call.1} parent=1 // pred_check_branch
      %71 = sbr.rel (0) target = $region29
    $region28: #{tpu_custom_call.1} parent=1 // pred_region
      %73 = dma.done [#allocation5], 4096
    $region29: #{tpu_custom_call.1} parent=1 // pred_fallthru
      _
    // Predicated region
    $region30: #{tpu_custom_call.1} parent=1 // pred_check
      _
    $region31: #{tpu_custom_call.1} parent=1 // pred_check_branch
      %75 = sbr.rel (0) target = $region33
    $region32: #{tpu_custom_call.1} parent=1 // pred_region
      %77 = dma.done [#allocation8], 48
    $region33: #{tpu_custom_call.1} parent=1 // pred_fallthru
      _
    %v78 = vld [vmem:[#allocation2] sm:$0xff]
    %v79 = vld [vmem:[#allocation4] sm:$0xff]
    %v80 = vld [vmem:[#allocation4 + $0x8] sm:$0xff]
    %v81 = vld [vmem:[#allocation4 + $0x10] sm:$0xff]
    %v82 = vld [vmem:[#allocation4 + $0x18] sm:$0xff]
    %v83 = vld [vmem:[#allocation4 + $0x20] sm:$0xff]
    %v84 = vld [vmem:[#allocation4 + $0x28] sm:$0xff]
    %v85 = vld [vmem:[#allocation4 + $0x30] sm:$0xff]
    %v86 = vld [vmem:[#allocation4 + $0x38] sm:$0xff]
    %v87 = vld [vmem:[#allocation7] sm:$0x1]
    %v89 = vperm.slane %v87, 0
    %vm91 = vcmask 523264
    %v93 = vsel %vm91, %v78, 0
    %95 = vmatpush.msra.mxu0 0.0
    %96 = vmatpush.msra.mxu0 0.0
    %97 = vmatpush.msra.mxu0 0.0
    %98 = vmatpush.msra.mxu0 0.0
    %99 = vmatpush.msra.mxu0 0.0
    %100 = vmatpush.msra.mxu0 0.0
    %101 = vmatpush.msra.mxu0 0.0
    %102 = vmatpush.msra.mxu0 0.0
    %103 = vmatpush.msra.mxu0 %v86
    %104 = vmatpush.msra.mxu0 %v85
    %105 = vmatpush.msra.mxu0 %v84
    %106 = vmatpush.msra.mxu0 %v83
    %107 = vmatpush.msra.mxu0 %v82
    %108 = vmatpush.msra.mxu0 %v81
    %109 = vmatpush.msra.mxu0 %v80
    %110 = vmatpush.msra.mxu0 %v79
    %111 = vmatmul.f32.gmra.mxu0 %v93
    %v112 = vpop.f32.mrf.mxu0
    %v113 = vadd.f32 %v89, %v112
    %114 = vdwg.mxu0
    %v115 = vmax.f32 %v113, 0.0
    %v116 = vld [vmem:[#allocation6] sm:$0xff]
    %v117 = vld [vmem:[#allocation6 + $0x8] sm:$0xff]
    %v118 = vld [vmem:[#allocation6 + $0x10] sm:$0xff]
    %v119 = vld [vmem:[#allocation6 + $0x18] sm:$0xff]
    %v120 = vld [vmem:[#allocation6 + $0x20] sm:$0xff]
    %v121 = vld [vmem:[#allocation6 + $0x28] sm:$0xff]
    %v122 = vld [vmem:[#allocation6 + $0x30] sm:$0xff]
    %v123 = vld [vmem:[#allocation6 + $0x38] sm:$0xff]
    %v124 = vld [vmem:[#allocation6 + $0x40] sm:$0xff]
    %v125 = vld [vmem:[#allocation6 + $0x48] sm:$0xff]
    %v126 = vld [vmem:[#allocation6 + $0x50] sm:$0xff]
    %v127 = vld [vmem:[#allocation6 + $0x58] sm:$0xff]
    %v128 = vld [vmem:[#allocation6 + $0x60] sm:$0xff]
    %v129 = vld [vmem:[#allocation6 + $0x68] sm:$0xff]
    %v130 = vld [vmem:[#allocation6 + $0x70] sm:$0xff]
    %v131 = vld [vmem:[#allocation6 + $0x78] sm:$0xff]
    %s132 = scalar_lea.vmem [#allocation7], 1
    %v133 = vld [vmem:[%s132] sm:$0x1]
    %v135 = vperm.slane %v133, 0
    %137 = vmatpush.msra.mxu0 %v131
    %138 = vmatpush.msra.mxu0 %v130
    %139 = vmatpush.msra.mxu0 %v129
    %140 = vmatpush.msra.mxu0 %v128
    %141 = vmatpush.msra.mxu0 %v127
    %142 = vmatpush.msra.mxu0 %v126
    %143 = vmatpush.msra.mxu0 %v125
    %144 = vmatpush.msra.mxu0 %v124
    %145 = vmatpush.msra.mxu0 %v123
    %146 = vmatpush.msra.mxu0 %v122
    %147 = vmatpush.msra.mxu0 %v121
    %148 = vmatpush.msra.mxu0 %v120
    %149 = vmatpush.msra.mxu0 %v119
    %150 = vmatpush.msra.mxu0 %v118
    %151 = vmatpush.msra.mxu0 %v117
    %152 = vmatpush.msra.mxu0 %v116
    %153 = vmatmul.f32.gmra.mxu0 %v115
    %v154 = vpop.f32.mrf.mxu0
    %v155 = vadd.f32 %v135, %v154
    %156 = vdwg.mxu0
    %v157 = vmax.f32 %v155, 0.0
    %s158 = scalar_lea.vmem [#allocation6], 128
    %v159 = vld [vmem:[%s158] sm:$0xff]
    %v160 = vld [vmem:[%s158 + $0x8] sm:$0xff]
    %v161 = vld [vmem:[%s158 + $0x10] sm:$0xff]
    %v162 = vld [vmem:[%s158 + $0x18] sm:$0xff]
    %v163 = vld [vmem:[%s158 + $0x20] sm:$0xff]
    %v164 = vld [vmem:[%s158 + $0x28] sm:$0xff]
    %v165 = vld [vmem:[%s158 + $0x30] sm:$0xff]
    %v166 = vld [vmem:[%s158 + $0x38] sm:$0xff]
    %v167 = vld [vmem:[%s158 + $0x40] sm:$0xff]
    %v168 = vld [vmem:[%s158 + $0x48] sm:$0xff]
    %v169 = vld [vmem:[%s158 + $0x50] sm:$0xff]
    %v170 = vld [vmem:[%s158 + $0x58] sm:$0xff]
    %v171 = vld [vmem:[%s158 + $0x60] sm:$0xff]
    %v172 = vld [vmem:[%s158 + $0x68] sm:$0xff]
    %v173 = vld [vmem:[%s158 + $0x70] sm:$0xff]
    %v174 = vld [vmem:[%s158 + $0x78] sm:$0xff]
    %s175 = scalar_lea.vmem [#allocation7], 2
    %v176 = vld [vmem:[%s175] sm:$0x1]
    %v178 = vperm.slane %v176, 0
    %180 = vmatpush.msra.mxu0 %v174
    %181 = vmatpush.msra.mxu0 %v173
    %182 = vmatpush.msra.mxu0 %v172
    %183 = vmatpush.msra.mxu0 %v171
    %184 = vmatpush.msra.mxu0 %v170
    %185 = vmatpush.msra.mxu0 %v169
    %186 = vmatpush.msra.mxu0 %v168
    %187 = vmatpush.msra.mxu0 %v167
    %188 = vmatpush.msra.mxu0 %v166
    %189 = vmatpush.msra.mxu0 %v165
    %190 = vmatpush.msra.mxu0 %v164
    %191 = vmatpush.msra.mxu0 %v163
    %192 = vmatpush.msra.mxu0 %v162
    %193 = vmatpush.msra.mxu0 %v161
    %194 = vmatpush.msra.mxu0 %v160
    %195 = vmatpush.msra.mxu0 %v159
    %196 = vmatmul.f32.gmra.mxu0 %v157
    %v197 = vpop.f32.mrf.mxu0
    %v198 = vadd.f32 %v178, %v197
    %199 = vdwg.mxu0
    %200 = vxpose.xlu0.b32.start [1/16] %v198, 128
    %201 = vxpose.xlu0.b32.cont [2/16] 0.0, 128
    %202 = vxpose.xlu0.b32.cont [3/16] 0.0, 128
    %203 = vxpose.xlu0.b32.cont [4/16] 0.0, 128
    %204 = vxpose.xlu0.b32.cont [5/16] 0.0, 128
    %205 = vxpose.xlu0.b32.cont [6/16] 0.0, 128
    %206 = vxpose.xlu0.b32.cont [7/16] 0.0, 128
    %207 = vxpose.xlu0.b32.cont [8/16] 0.0, 128
    %208 = vxpose.xlu0.b32.cont [9/16] 0.0, 128
    %209 = vxpose.xlu0.b32.cont [10/16] 0.0, 128
    %210 = vxpose.xlu0.b32.cont [11/16] 0.0, 128
    %211 = vxpose.xlu0.b32.cont [12/16] 0.0, 128
    %212 = vxpose.xlu0.b32.cont [13/16] 0.0, 128
    %213 = vxpose.xlu0.b32.cont [14/16] 0.0, 128
    %214 = vxpose.xlu0.b32.cont [15/16] 0.0, 128
    %215 = vxpose.xlu0.b32.end [16/16] 0.0, 128
    %v216 = vpop.trf.xlu0
    %v217 = vpop.trf.xlu0
    %v218 = vpop.trf.xlu0
    %v219 = vpop.trf.xlu0
    %v220 = vpop.trf.xlu0
    %v221 = vpop.trf.xlu0
    %v222 = vpop.trf.xlu0
    %v223 = vpop.trf.xlu0
    %v224 = vpop.trf.xlu0
    %v225 = vpop.trf.xlu0
    %v226 = vpop.trf.xlu0
    %v227 = vpop.trf.xlu0
    %v228 = vpop.trf.xlu0
    %v229 = vpop.trf.xlu0
    %v230 = vpop.trf.xlu0
    %v231 = vpop.trf.xlu0
    %vm232 = vcmask 64512
    %233 = vst.msk [vmem:[%s4] sm:$0xff] %vm232, %v216
    %vm234 = vcmask 58368
    %235 = vst.msk [vmem:[%s4 + $0x8] sm:$0x3] %vm234, %v217
    // Predicated region
    $region34: #{tpu_custom_call.1} parent=1 // pred_check
      _
    $region35: #{tpu_custom_call.1} parent=1 // pred_check_branch
      %237 = sbr.rel (0) target = $region37
    $region36: #{tpu_custom_call.1} parent=1 // pred_region
      _
    $region37: #{tpu_custom_call.1} parent=1 // pred_fallthru
      _
    // Predicated region
    $region38: #{tpu_custom_call.1} parent=1 // pred_check
      _
    $region39: #{tpu_custom_call.1} parent=1 // pred_check_branch
      %239 = sbr.rel (0) target = $region41
    $region40: #{tpu_custom_call.1} parent=1 // pred_region
      _
    $region41: #{tpu_custom_call.1} parent=1 // pred_fallthru
      _
    %240 = vsyncpa [#allocation3], 1
    %241 = vsyncpa [#allocation5], 1
    %242 = vsyncpa [#allocation8], 1

</llo_original>
